<compile_context>
chip_gen: v7x
topology: tpu7x:2x2x1
jax: 0.10.0
libtpu: 0.0.40
codegen_flags: <defaults>
</compile_context>

<pallas_src>
import math

import jax
import jax.numpy as jnp
import numpy as np
from jax import lax
from jax.experimental import pallas as pl
from jax.experimental.pallas import tpu as pltpu


# ----------------------------------------------------------------------------
# Pallas kernel: one dense (Dt,K) x (K,Et) MXU matmul per grid step
# ----------------------------------------------------------------------------
def _pointer_logits_kernel(dec_ref, enc_ref, out_ref):
    # dec_ref: (Dt, K) bf16 (already scaled by 1/sqrt(K))
    # enc_ref: (Et, K) bf16
    # out_ref: (Dt, Et)
    acc = lax.dot_general(
        dec_ref[...], enc_ref[...],
        dimension_numbers=(((1,), (1,)), ((), ())),   # contract over K
        preferred_element_type=jnp.float32,           # f32 accumulation
    )
    out_ref[...] = acc.astype(out_ref.dtype)


def _vmem_limit_bytes():
    """Per-generation scoped-VMEM limit (v5e/v6e: 128 MiB, v7x: 64 MiB)."""
    cap = 64 * 1024 * 1024  # conservative fallback = v7x per-TC physical VMEM
    try:
        info = pltpu.get_tpu_info()
        cap = int(getattr(info, "vmem_capacity_bytes", cap) or cap)
    except Exception:
        pass
    # Leave headroom for compiler-internal scratch / double-buffer slack.
    return min(int(cap * 0.75), 100 * 1024 * 1024)


def _pick_tiles(D, E, K, in_bytes, out_bytes, budget):
    """Largest MXU-friendly (Dt, Et) whose double-buffered blocks fit VMEM."""
    def cost(dt, et):
        return 2 * (dt * K + et * K) * in_bytes + 2 * dt * et * out_bytes

    dt_cands = [D] if D <= 512 else [512, 256, 128, 64, 32, 16]
    et_cands = [E] if E <= 512 else [512, 256, 128]
    for dt in dt_cands:          # prefer large Dt: cuts re-streaming of enc
        for et in et_cands:
            if cost(dt, et) <= budget:
                return dt, et
    return dt_cands[-1], et_cands[-1]


def pointer_logits(decoder_output, encoder_output, out_dtype=jnp.bfloat16):
    """decoder_output: (D, B, K), encoder_output: (E, B, K) ->
    logits: (D, B, E) == einsum('dbk,ebk->dbe') / sqrt(K)."""
    D, B, K = decoder_output.shape
    E, B2, K2 = encoder_output.shape
    assert B == B2 and K == K2

    scale = 1.0 / math.sqrt(float(K))

    # Batch-major bf16 operands; scale folded into dec.  XLA fuses the
    # scale + transpose + cast into one pass (writes bf16: half the bytes).
    dec_b = jnp.transpose(decoder_output * scale, (1, 0, 2)).astype(jnp.bfloat16)  # (B,D,K)
    enc_b = jnp.transpose(encoder_output, (1, 0, 2)).astype(jnp.bfloat16)          # (B,E,K)

    in_bytes = 2
    out_bytes = jnp.dtype(out_dtype).itemsize
    vmem_limit = _vmem_limit_bytes()
    Dt, Et = _pick_tiles(D, E, K, in_bytes, out_bytes, vmem_limit - (4 << 20))
    nD, nE = pl.cdiv(D, Dt), pl.cdiv(E, Et)

    # Pick which sequence axis is the inner (fast) grid axis so the operand
    # that gets re-streamed across the outer-tile count is the smaller one.
    if (nD - 1) * E * K <= (nE - 1) * D * K:
        grid = (B, nD, nE)                       # enc re-streamed nD times
        dec_map = lambda b, di, ei: (b, di, 0)
        enc_map = lambda b, di, ei: (b, ei, 0)
        out_map = lambda b, di, ei: (b, di, ei)
    else:
        grid = (B, nE, nD)                       # dec re-streamed nE times
        dec_map = lambda b, ei, di: (b, di, 0)
        enc_map = lambda b, ei, di: (b, ei, 0)
        out_map = lambda b, ei, di: (b, di, ei)

    out_bde = pl.pallas_call(
        _pointer_logits_kernel,
        out_shape=jax.ShapeDtypeStruct((B, D, E), out_dtype),
        grid_spec=pltpu.PrefetchScalarGridSpec(
            num_scalar_prefetch=0,
            grid=grid,
            in_specs=[
                # Leading batch dim is Squeezed -> dense 2-D refs in-kernel.
                pl.BlockSpec((None, Dt, K), dec_map),
                pl.BlockSpec((None, Et, K), enc_map),
            ],
            out_specs=pl.BlockSpec((None, Dt, Et), out_map),
        ),
        compiler_params=pltpu.CompilerParams(
            # No reduction axis (K lives fully in-block): every grid axis is
            # independent -> megacore (v7x) can shard any of them.
            dimension_semantics=("parallel", "parallel", "parallel"),
            vmem_limit_bytes=vmem_limit,
        ),
    )(dec_b, enc_b)

    # Back to the module's sequence-batch-features convention (D, B, E).
    return jnp.transpose(out_bde, (1, 0, 2))


# ----------------------------------------------------------------------------
# Synthetic decoder (the wrapped `decoder` is an external module -> stub)
# ----------------------------------------------------------------------------
# TODO(synk): the real `decoder` is injected at __init__ and undefined here;
# a deterministic linear projection stands in for it (plain-JAX glue).
def synthetic_decoder(inputs_sbi, w, b):
    # inputs_sbi: (D, B, In)  ->  decoder_output: (D, B, K)
    return jnp.einsum("dbi,ik->dbk", inputs_sbi, w) + b


class PointerDecoderWrapper:
    def __init__(self, decoder_fn):
        self.decoder = decoder_fn

    def forward(self, inputs, encoder_state, prev_decoder_state=None,
                controls=None, search=False):
        decoder_state = self.decoder(inputs, encoder_state,
                                     prev_decoder_state, controls, search)
        target_logits = pointer_logits(decoder_state["decoder_output"],
                                       encoder_state["output"])
        decoder_state["target_logits"] = target_logits
        return decoder_state

    # TODO(synk): next_state (search-time pointer masking + log_softmax) is
    # not part of the forward pass and is not translated here.


# ----------------------------------------------------------------------------
# Demo / self-check
# ----------------------------------------------------------------------------
if __name__ == "__main__":
    key = jax.random.PRNGKey(0)
    D, E, B, K, IN = 8, 16, 2, 32, 16   # dec seq, enc seq, batch, hidden, in-dim

    k1, k2, k3, k4 = jax.random.split(key, 4)
    inputs = jax.random.normal(k1, (D, B, IN), dtype=jnp.float32)        # (seq, batch, feat)
    encoder_output = jax.random.normal(k2, (E, B, K), dtype=jnp.float32)
    w_dec = jax.random.normal(k3, (IN, K), dtype=jnp.float32) * 0.1
    b_dec = jax.random.normal(k4, (K,), dtype=jnp.float32) * 0.01

    def decoder_fn(inp, enc_state, prev=None, controls=None, search=False):
        return {"decoder_output": synthetic_decoder(inp, w_dec, b_dec)}

    wrapper = PointerDecoderWrapper(decoder_fn)
    encoder_state = {"output": encoder_output}

    state = wrapper.forward(inputs, encoder_state)
    logits = jax.block_until_ready(state["target_logits"])
    assert logits.shape == (D, B, E)
    logits_f32 = np.asarray(logits, dtype=np.float32)

    dec_out = synthetic_decoder(inputs, w_dec, b_dec)
    scale = 1.0 / math.sqrt(K)

    # Reference 1: same math as the kernel (bf16-rounded scaled operands,
    # f32 accumulation), loose enough to absorb the final bf16 output rounding.
    dec_bf = np.asarray((dec_out * scale).astype(jnp.bfloat16).astype(jnp.float32))
    enc_bf = np.asarray(encoder_output.astype(jnp.bfloat16).astype(jnp.float32))
    ref_bf = np.einsum("dbk,ebk->dbe", dec_bf, enc_bf)
    np.testing.assert_allclose(logits_f32, ref_bf, atol=2e-2, rtol=2e-2)

    # Reference 2: exact f32 module semantics (loose tol for bf16 end-to-end).
    ref_f32 = np.einsum("dbk,ebk->dbe",
                        np.asarray(dec_out, np.float32),
                        np.asarray(encoder_output, np.float32)) * scale
    np.testing.assert_allclose(logits_f32, ref_f32, atol=8e-2, rtol=8e-2)

    print("KERNEL_OK")
</pallas_src>

<mosaic_0001>
module attributes {stable_mosaic.version = 11 : i64} {
  func.func @_pointer_logits_kernel(%arg0: i32, %arg1: i32, %arg2: i32, %arg3: memref<1x8x32xbf16, #tpu.memory_space<vmem>>, %arg4: memref<1x16x32xbf16, #tpu.memory_space<vmem>>, %arg5: memref<1x8x16xbf16, #tpu.memory_space<vmem>>) attributes {dimension_semantics = [#tpu.dimension_semantics<parallel>, #tpu.dimension_semantics<parallel>, #tpu.dimension_semantics<parallel>], iteration_bounds = array<i64: 2, 1, 1>, scalar_prefetch = 0 : i64, scratch_operands = 0 : i64, tpu.core_type = #tpu.core_type<tc>, window_params = [{transform_indices = @transform_0, window_bounds = array<i64: 1, 8, 32>}, {transform_indices = @transform_1, window_bounds = array<i64: 1, 16, 32>}, {transform_indices = @transform_2, window_bounds = array<i64: 1, 8, 16>}]} {
    %c0 = arith.constant 0 : index
    %c0_0 = arith.constant 0 : index
    %c0_1 = arith.constant 0 : index
    %0 = vector.load %arg3[%c0, %c0_0, %c0_1] : memref<1x8x32xbf16, #tpu.memory_space<vmem>>, vector<1x8x32xbf16>
    %1 = vector.shape_cast %0 : vector<1x8x32xbf16> to vector<8x32xbf16>
    %c0_2 = arith.constant 0 : index
    %c0_3 = arith.constant 0 : index
    %c0_4 = arith.constant 0 : index
    %2 = vector.load %arg4[%c0_2, %c0_3, %c0_4] : memref<1x16x32xbf16, #tpu.memory_space<vmem>>, vector<1x16x32xbf16>
    %3 = vector.shape_cast %2 : vector<1x16x32xbf16> to vector<16x32xbf16>
    %cst = arith.constant dense<0.000000e+00> : vector<8x16xf32>
    %4 = tpu.matmul %1, %3, %cst {dimension_numbers = #tpu.dot_dimension_numbers<[1], [1], [0], [0], [0, 0, 1, 0], [], []>} : vector<8x32xbf16>, vector<16x32xbf16>, vector<8x16xf32> -> vector<8x16xf32>
    %5 = arith.truncf %4 : vector<8x16xf32> to vector<8x16xbf16>
    %c0_5 = arith.constant 0 : index
    %c0_6 = arith.constant 0 : index
    %c0_7 = arith.constant 0 : index
    %6 = vector.load %arg5[%c0_5, %c0_6, %c0_7] : memref<1x8x16xbf16, #tpu.memory_space<vmem>>, vector<1x8x16xbf16>
    %7 = vector.shape_cast %6 : vector<1x8x16xbf16> to vector<8x16xbf16>
    %8 = vector.shape_cast %5 : vector<8x16xbf16> to vector<1x8x16xbf16>
    tpu.vector_store %arg5[%c0_5, %c0_6, %c0_7], %8 {strides = array<i32>} : memref<1x8x16xbf16, #tpu.memory_space<vmem>>, vector<1x8x16xbf16>,
    return
  }
  func.func @transform_0(%arg0: i32, %arg1: i32, %arg2: i32) -> (i32, i32, i32) {
    %c0_i32 = arith.constant 0 : i32
    %c0_i32_0 = arith.constant 0 : i32
    return %arg0, %arg1, %c0_i32 : i32, i32, i32
  }
  func.func @transform_1(%arg0: i32, %arg1: i32, %arg2: i32) -> (i32, i32, i32) {
    %c0_i32 = arith.constant 0 : i32
    %c0_i32_0 = arith.constant 0 : i32
    return %arg0, %arg2, %c0_i32 : i32, i32, i32
  }
  func.func @transform_2(%arg0: i32, %arg1: i32, %arg2: i32) -> (i32, i32, i32) {
    %c0_i32 = arith.constant 0 : i32
    return %arg0, %arg1, %arg2 : i32, i32, i32
  }
}

</mosaic_0001>

<llo_original>
// kernel: tpu_custom_call.1
$region0: #{tpu_custom_call.1}
  #allocation0 [shape = 'u32[]', space=smem, size = 0x4, offset = 0x4, fixed_abs, tag = 'smem constant byte address 0x4 - core index']
  #allocation1 [shape = 'u32[144,128]{1,0:T(1,128)}', space=vmem, size = 0x12000, scoped, tag = 'internal scratch']
  %s0 = inlined_call_operand.hbm [shape: bf16[2,8,32], index: 0, kind: input, shape index: {}]
  %s1 = inlined_call_operand.hbm [shape: bf16[2,16,32], index: 1, kind: input, shape index: {}]
  %s2 = inlined_call_operand.hbm [shape: bf16[2,8,16], index: 2, kind: output, shape index: {}]
  %s3 = sld [smem:[#allocation0]]
  $region49: #{tpu_custom_call.1} parent=0
    _
  %s5 = ssub.s32 1, %s3
  %s6 = scalar_select 0, %s5, %s3
  $region1: #{tpu_custom_call.1} parent=0
    #allocation2 [shape = 'u8[4096]{0}', space=vmem, size = 0x1000, scoped, tag = 'input window, operand 0']
    #allocation3 [shape = 's32[2]{0}', space=sflag, size = 0x8, scoped, tag = 'scoped memory for tpu_custom_call.1']
    #allocation4 [shape = 's32[2]{0}', space=sflag, size = 0x8, scoped, tag = 'scoped memory for tpu_custom_call.1']
    #allocation5 [shape = 'u8[8192]{0}', space=vmem, size = 0x2000, scoped, tag = 'input window, operand 1']
    #allocation6 [shape = 's32[2]{0}', space=sflag, size = 0x8, scoped, tag = 'scoped memory for tpu_custom_call.1']
    #allocation7 [shape = 'u8[4096]{0}', space=vmem, size = 0x1000, scoped, tag = 'output window, operand 0']
    %7 = vsyncpa [#allocation3], 0
    %s8 = scalar_lea.sflag [#allocation3], 1
    %9 = vsyncpa %s8, 0
    %10 = vsyncpa [#allocation6], 0
    %s11 = scalar_lea.sflag [#allocation6], 1
    %12 = vsyncpa %s11, 0
    %13 = vsyncpa [#allocation4], 0
    %s14 = scalar_lea.sflag [#allocation4], 1
    %15 = vsyncpa %s14, 0
    loop: start=0, step=1, limit=4
    $region2: #{tpu_custom_call.1} parent=1 // loop_pre_header
      _
    $region3: #{tpu_custom_call.1} parent=1 // loop_header
      %s17 = sphi 0, %s21
      %p18 = scmp.ge.s32.totalorder %s17, 4
      %s24 = sphi 0, %s43
      %s25 = sphi 0, %s39
      %s26 = sphi 0, %s35
      %s27 = sphi 0, %s24
      %s28 = sphi 0, %s25
      %s29 = sphi 0, %s26
      %s30 = sphi 0, %s27
      %s31 = sphi 0, %s28
      %s32 = sphi 0, %s29
      %s48 = sphi 0, %s50
      %s51 = sphi 0, %s48
      %s52 = sphi 0, %s51
      %s68 = sphi 0, %s52
      %s76 = sphi 0, %s78
      %s79 = sphi 0, %s76
      %s80 = sphi 0, %s79
      %s96 = sphi 0, %s80
      %s106 = sphi 0, %s108
      %s109 = sphi 0, %s106
      %s110 = sphi 0, %s109
      %s126 = sphi 0, %s110
    $region4: #{tpu_custom_call.1} parent=1 // loop_header_branch
      %20 = sbr.rel (%p18) target = $region8
    $region5: #{tpu_custom_call.1} parent=1 // loop_body
      %s22 = ssub.s32 %s17, 1
      %s23 = ssub.s32 %s17, 2
      %s33 = sadd.s32 1, %s26
      %p34 = scmp.ge.s32.totalorder %s33, 1
      %s35 = scalar_select %p34, 0, %s33
      %s36 = sadd.s32 1, %s25
      %s37 = scalar_select %p34, %s36, %s25
      %p38 = scmp.ge.s32.totalorder %s37, 1
      %s39 = scalar_select %p38, 0, %s37
      %s40 = sadd.s32 1, %s24
      %s41 = scalar_select %p38, %s40, %s24
      %p42 = scmp.ge.s32.totalorder %s41, 2
      %s43 = scalar_select %p42, 0, %s41
      %s44 = ssub.s32 %s24, %s43
      %s45 = ssub.s32 %s25, %s39
      %s46 = sor.u32 %s44, %s45
      %p47 = scmp.eq.s32.totalorder %s46, 0
      %s49 = sadd.s32 %s48, 1
      %s50 = scalar_select %p47, %s48, %s49
      %p53 = pneg %p47
      %p54 = scmp.eq.s32.totalorder %s17, 1
      %p55 = por %p53, %p54
      %p56 = scmp.ne.s32.totalorder %s48, %s51
      %p57 = scmp.eq.s32.totalorder %s17, 0
      %p58 = por %p56, %p57
      %p59 = scmp.ne.s32.totalorder %s48, %s51
      %p60 = scmp.eq.s32.totalorder %s22, 1
      %p61 = por %p59, %p60
      %p62 = scmp.ne.s32.totalorder %s51, %s52
      %p63 = scmp.eq.s32.totalorder %s22, 0
      %p64 = por %p62, %p63
      %p65 = scmp.ne.s32.totalorder %s51, %s52
      %p66 = scmp.eq.s32.totalorder %s23, 1
      %p67 = por %p65, %p66
      %p69 = scmp.ne.s32.totalorder %s52, %s68
      %p70 = scmp.eq.s32.totalorder %s23, 0
      %p71 = por %p69, %p70
      %s72 = ssub.s32 %s24, %s43
      %s73 = ssub.s32 %s26, %s35
      %s74 = sor.u32 %s72, %s73
      %p75 = scmp.eq.s32.totalorder %s74, 0
      %s77 = sadd.s32 %s76, 1
      %s78 = scalar_select %p75, %s76, %s77
      %p81 = pneg %p75
      %p82 = scmp.eq.s32.totalorder %s17, 1
      %p83 = por %p81, %p82
      %p84 = scmp.ne.s32.totalorder %s76, %s79
      %p85 = scmp.eq.s32.totalorder %s17, 0
      %p86 = por %p84, %p85
      %p87 = scmp.ne.s32.totalorder %s76, %s79
      %p88 = scmp.eq.s32.totalorder %s22, 1
      %p89 = por %p87, %p88
      %p90 = scmp.ne.s32.totalorder %s79, %s80
      %p91 = scmp.eq.s32.totalorder %s22, 0
      %p92 = por %p90, %p91
      %p93 = scmp.ne.s32.totalorder %s79, %s80
      %p94 = scmp.eq.s32.totalorder %s23, 1
      %p95 = por %p93, %p94
      %p97 = scmp.ne.s32.totalorder %s80, %s96
      %p98 = scmp.eq.s32.totalorder %s23, 0
      %p99 = por %p97, %p98
      %s100 = ssub.s32 %s24, %s43
      %s101 = ssub.s32 %s25, %s39
      %s102 = sor.u32 %s100, %s101
      %s103 = ssub.s32 %s26, %s35
      %s104 = sor.u32 %s102, %s103
      %p105 = scmp.eq.s32.totalorder %s104, 0
      %s107 = sadd.s32 %s106, 1
      %s108 = scalar_select %p105, %s106, %s107
      %p111 = pneg %p105
      %p112 = scmp.eq.s32.totalorder %s17, 1
      %p113 = por %p111, %p112
      %p114 = scmp.ne.s32.totalorder %s106, %s109
      %p115 = scmp.eq.s32.totalorder %s17, 0
      %p116 = por %p114, %p115
      %p117 = scmp.ne.s32.totalorder %s106, %s109
      %p118 = scmp.eq.s32.totalorder %s22, 1
      %p119 = por %p117, %p118
      %p120 = scmp.ne.s32.totalorder %s109, %s110
      %p121 = scmp.eq.s32.totalorder %s22, 0
      %p122 = por %p120, %p121
      %p123 = scmp.ne.s32.totalorder %s109, %s110
      %p124 = scmp.eq.s32.totalorder %s23, 1
      %p125 = por %p123, %p124
      %p127 = scmp.ne.s32.totalorder %s110, %s126
      %p128 = scmp.eq.s32.totalorder %s23, 0
      %p129 = por %p127, %p128
      %p130 = scmp.le.s32.totalorder 1, %s17
      %p131 = scmp.lt.s32.totalorder %s17, 3
      %p132 = pnand %p130, %p131
      %p133 = pneg %p132
      // Predicated region
      $region9: #{tpu_custom_call.1} parent=5 // pred_check
        _
      $region10: #{tpu_custom_call.1} parent=5 // pred_check_branch
        %135 = sbr.rel (%p132) target = $region12
      $region11: #{tpu_custom_call.1} parent=5 // pred_region
        %s136 = ssub.s32 %s17, 1
      $region12: #{tpu_custom_call.1} parent=5 // pred_fallthru
        _
      %p137 = scmp.lt.s32.totalorder %s17, 2
      // Predicated region
      $region13: #{tpu_custom_call.1} parent=5 // pred_check
        %p138 = pneg %p137
      $region14: #{tpu_custom_call.1} parent=5 // pred_check_branch
        %140 = sbr.rel (%p138) target = $region16
      $region15: #{tpu_custom_call.1} parent=5 // pred_region
        // Predicated region
        $region17: #{tpu_custom_call.1} parent=15 // pred_check
          %p141 = pneg %p58
        $region18: #{tpu_custom_call.1} parent=15 // pred_check_branch
          %143 = sbr.rel (%p141) target = $region20
        $region19: #{tpu_custom_call.1} parent=15 // pred_region
          %s144 = sand.u32 %s48, 1
          %s145 = scalar_lea.sflag [#allocation3], %s144
          %s146 = sand.u32 %s48, 1
          %s147 = smul.addr %s146, 4
          %s148 = scalar_lea.vmem [#allocation2], %s147
          %s150 = ssub.s32 64, 64
          %151 = vsyncadd %s145, %s150
          %s152 = sadd.s32 %s25, %s24
          %s153 = smul.addr %s152, 64
          %s154 = scalar_lea.hbm %s0, %s153
          %s156 = sshll.u32 %s148, 4
          %s157 = int_to_ptr.vmem [resolvable:$true] %s156
          %159 = dma.hbm_to_vmem [thread:$0]  %s154, 64, %s157, %s145
        $region20: #{tpu_custom_call.1} parent=15 // pred_fallthru
          _
        // Predicated region
        $region21: #{tpu_custom_call.1} parent=15 // pred_check
          %p160 = pneg %p86
        $region22: #{tpu_custom_call.1} parent=15 // pred_check_branch
          %162 = sbr.rel (%p160) target = $region24
        $region23: #{tpu_custom_call.1} parent=15 // pred_region
          %s163 = sand.u32 %s76, 1
          %s164 = scalar_lea.sflag [#allocation6], %s163
          %s165 = sand.u32 %s76, 1
          %s166 = smul.addr %s165, 8
          %s167 = scalar_lea.vmem [#allocation5], %s166
          %s168 = smul.u32 2, %s26
          %s170 = ssub.s32 128, 128
          %171 = vsyncadd %s164, %s170
          %s172 = smul.addr %s24, 2
          %s173 = sadd.s32 %s168, %s172
          %s174 = smul.addr %s173, 64
          %s175 = scalar_lea.hbm %s1, %s174
          %s176 = sshll.u32 %s167, 4
          %s177 = int_to_ptr.vmem [resolvable:$true] %s176
          %182 = dma.hbm_to_vmem [thread:$0]  %s175, 128, %s177, %s164, 64, 64, 4
        $region24: #{tpu_custom_call.1} parent=15 // pred_fallthru
          _
      $region16: #{tpu_custom_call.1} parent=5 // pred_fallthru
        _
      %p183 = scmp.le.s32.totalorder 1, %s17
      %p184 = scmp.lt.s32.totalorder %s17, 3
      %p185 = pnand %p183, %p184
      %p186 = pneg %p185
      // Predicated region
      $region25: #{tpu_custom_call.1} parent=5 // pred_check
        _
      $region26: #{tpu_custom_call.1} parent=5 // pred_check_branch
        %188 = sbr.rel (%p185) target = $region28
      $region27: #{tpu_custom_call.1} parent=5 // pred_region
        %s189 = ssub.s32 %s17, 1
        %s190 = sand.u32 %s51, 1
        %s191 = scalar_lea.sflag [#allocation3], %s190
        %s192 = sand.u32 %s51, 1
        %s193 = smul.addr %s192, 4
        %s194 = scalar_lea.vmem [#allocation2], %s193
        // Predicated region
        $region29: #{tpu_custom_call.1} parent=27 // pred_check
          %p195 = pneg %p64
        $region30: #{tpu_custom_call.1} parent=27 // pred_check_branch
          %197 = sbr.rel (%p195) target = $region32
        $region31: #{tpu_custom_call.1} parent=27 // pred_region
          %198 = dma.done %s191, 64
        $region32: #{tpu_custom_call.1} parent=27 // pred_fallthru
          _
        %s199 = sand.u32 %s79, 1
        %s200 = scalar_lea.sflag [#allocation6], %s199
        %s201 = sand.u32 %s79, 1
        %s202 = smul.addr %s201, 8
        %s203 = scalar_lea.vmem [#allocation5], %s202
        // Predicated region
        $region33: #{tpu_custom_call.1} parent=27 // pred_check
          %p204 = pneg %p92
        $region34: #{tpu_custom_call.1} parent=27 // pred_check_branch
          %206 = sbr.rel (%p204) target = $region36
        $region35: #{tpu_custom_call.1} parent=27 // pred_region
          %207 = dma.done %s200, 128
        $region36: #{tpu_custom_call.1} parent=27 // pred_fallthru
          _
        %s208 = sand.u32 %s51, 1
        %s209 = scalar_lea.sflag [#allocation3], %s208
        %s210 = sand.u32 %s51, 1
        %s211 = smul.addr %s210, 4
        %s212 = scalar_lea.vmem [#allocation2], %s211
        %p213 = pneg %p64
        %p214 = pneg %p61
        %s215 = sand.u32 %s79, 1
        %s216 = scalar_lea.sflag [#allocation6], %s215
        %s217 = sand.u32 %s79, 1
        %s218 = smul.addr %s217, 8
        %s219 = scalar_lea.vmem [#allocation5], %s218
        %p220 = pneg %p92
        %p221 = pneg %p89
        %p222 = pneg %p122
        %p223 = pneg %p119
        %s224 = sand.u32 %s109, 1
        %s225 = scalar_lea.sflag [#allocation4], %s224
        %s226 = sand.u32 %s109, 1
        %s227 = smul.addr %s226, 4
        %s228 = scalar_lea.vmem [#allocation7], %s227
        %s229 = smul.u32 2, %s29
        %v231 = vld [vmem:[%s194] sm:$0xf]
        %v232 = vld [vmem:[%s203] sm:$0xf]
        %v233 = vld [vmem:[%s203 + $0x4] sm:$0xf]
        %v236 = vunpack.c.l.b16 %v232
        %v237 = vunpack.c.l.b16 %v233
        %v238 = vpack.c.b16 %v237, %v236
        %vm239 = vcmask 261120
        %v241 = vsel %vm239, %v231, 0
        %v244 = vsel %vm239, %v238, 0
        %246 = vmatprep.subr.bf16.mxu0 0
        %247 = vmatpush1.bf16.xpose.msra.mxu0 %v244
        %248 = vmatprep.subr.bf16.mxu0 0
        %249 = vmatpush1.bf16.xpose.msra.mxu0 0
        %250 = vmatprep.subr.bf16.mxu0 0
        %251 = vmatpush1.bf16.xpose.msra.mxu0 0
        %252 = vmatprep.subr.bf16.mxu0 0
        %253 = vmatpush1.bf16.xpose.msra.mxu0 0
        %254 = vmatprep.subr.bf16.mxu0 0
        %255 = vmatpush1.bf16.xpose.msra.mxu0 0
        %256 = vmatprep.subr.bf16.mxu0 0
        %257 = vmatpush1.bf16.xpose.msra.mxu0 0
        %258 = vmatprep.subr.bf16.mxu0 0
        %259 = vmatpush1.bf16.xpose.msra.mxu0 0
        %260 = vmatprep.subr.bf16.mxu0 0
        %261 = vmatpush1.bf16.xpose.msra.mxu0 0
        %262 = vmatprep.subr.bf16.mxu0 0
        %263 = vmatpush1.bf16.xpose.msra.mxu0 0
        %264 = vmatprep.subr.bf16.mxu0 0
        %265 = vmatpush1.bf16.xpose.msra.mxu0 0
        %266 = vmatprep.subr.bf16.mxu0 0
        %267 = vmatpush1.bf16.xpose.msra.mxu0 0
        %268 = vmatprep.subr.bf16.mxu0 0
        %269 = vmatpush1.bf16.xpose.msra.mxu0 0
        %270 = vmatprep.subr.bf16.mxu0 0
        %271 = vmatpush1.bf16.xpose.msra.mxu0 0
        %272 = vmatprep.subr.bf16.mxu0 0
        %273 = vmatpush1.bf16.xpose.msra.mxu0 0
        %274 = vmatprep.subr.bf16.mxu0 0
        %275 = vmatpush1.bf16.xpose.msra.mxu0 0
        %276 = vmatprep.subr.bf16.mxu0 0
        %277 = vmatpush1.bf16.xpose.msra.mxu0 0
        %278 = vmatprep.mubr.bf16.mxu0 0
        %279 = vmatmul.mubr.bf16.gmra.mrb[0].mxu0 %v241
        %v280 = vpop.f32.mrb[0].mxu0
        %v281 = vadd.f32 0.0, %v280
        %v282 = vpop.f32.mrb[0].mxu0
        %v283 = vpop.f32.mrb[0].mxu0
        %v284 = vpop.f32.mrb[0].mxu0
        %285 = vdwg.mxu0
        %v286 = vpack.c.bf16 %v281, %v281
        %vm287 = vcmask 125952
        %288 = vst.msk [vmem:[%s228] sm:$0xf] %vm287, %v286
        %s289 = sand.u32 %s109, 1
        %s290 = scalar_lea.sflag [#allocation4], %s289
        %s291 = sand.u32 %s109, 1
        %s292 = smul.addr %s291, 4
        %s293 = scalar_lea.vmem [#allocation7], %s292
        // Predicated region
        $region37: #{tpu_custom_call.1} parent=27 // pred_check
          %p294 = pneg %p119
        $region38: #{tpu_custom_call.1} parent=27 // pred_check_branch
          %296 = sbr.rel (%p294) target = $region40
        $region39: #{tpu_custom_call.1} parent=27 // pred_region
          %s298 = ssub.s32 64, 64
          %299 = vsyncadd %s290, %s298
          %s300 = sadd.s32 %s29, %s28
          %s301 = sadd.s32 %s300, %s27
          %s302 = smul.addr %s301, 64
          %s303 = scalar_lea.hbm %s2, %s302
          %s305 = sshll.u32 %s293, 4
          %s306 = int_to_ptr.vmem [resolvable:$true] %s305
          %308 = dma.vmem_to_hbm [thread:$0]  %s306, 64, %s303, %s290
        $region40: #{tpu_custom_call.1} parent=27 // pred_fallthru
          _
      $region28: #{tpu_custom_call.1} parent=5 // pred_fallthru
        _
      %p309 = scmp.le.s32.totalorder 2, %s17
      // Predicated region
      $region41: #{tpu_custom_call.1} parent=5 // pred_check
        %p310 = pneg %p309
      $region42: #{tpu_custom_call.1} parent=5 // pred_check_branch
        %312 = sbr.rel (%p310) target = $region44
      $region43: #{tpu_custom_call.1} parent=5 // pred_region
        %s313 = ssub.s32 %s17, 2
        // Predicated region
        $region45: #{tpu_custom_call.1} parent=43 // pred_check
          %p314 = pneg %p125
        $region46: #{tpu_custom_call.1} parent=43 // pred_check_branch
          %316 = sbr.rel (%p314) target = $region48
        $region47: #{tpu_custom_call.1} parent=43 // pred_region
          %s317 = sand.u32 %s110, 1
          %s318 = scalar_lea.sflag [#allocation4], %s317
          %s319 = sand.u32 %s110, 1
          %s320 = smul.addr %s319, 4
          %s321 = scalar_lea.vmem [#allocation7], %s320
          %322 = dma.done %s318, 64
        $region48: #{tpu_custom_call.1} parent=43 // pred_fallthru
          _
      $region44: #{tpu_custom_call.1} parent=5 // pred_fallthru
        _
    $region6: #{tpu_custom_call.1} parent=1 // loop_footer
      %s21 = sadd.s32 1, %s17
    $region7: #{tpu_custom_call.1} parent=1 // loop_footer_branch
      %16 = sbr.rel target = $region3
    $region8: #{tpu_custom_call.1} parent=1 // loop_exit
      _
    %323 = vsyncpa [#allocation3], 1
    %s324 = scalar_lea.sflag [#allocation3], 1
    %325 = vsyncpa %s324, 1
    %326 = vsyncpa [#allocation6], 1
    %s327 = scalar_lea.sflag [#allocation6], 1
    %328 = vsyncpa %s327, 1
    %329 = vsyncpa [#allocation4], 1
    %s330 = scalar_lea.sflag [#allocation4], 1
    %331 = vsyncpa %s330, 1

</llo_original>
